<compile_context>
chip_gen: v7x
topology: tpu7x:2x2x1
jax: 0.10.0
libtpu: 0.0.40
codegen_flags: <defaults>
</compile_context>

<pallas_src>
import math
from functools import partial

import jax
import jax.numpy as jnp
from jax.experimental import pallas as pl
from jax.experimental.pallas import tpu as pltpu


def _cosine_linear_kernel(mxu_bf16, x_inv_ref, x_ref, w_ref, o_ref, w_inv_ref):
    """Grid = (out_tiles, batch_tiles); batch axis (1) is innermost.

    x_inv_ref : (TB, 1)  f32   sigma / max(||x_row||, eps), precomputed
    x_ref     : (TB, F)  input dtype (re-streamed per outer step)
    w_ref     : (TO, F)  input dtype (same block for every inner step)
    o_ref     : (TB, TO) output dtype
    w_inv_ref : (1, TO)  f32 VMEM scratch: cached inverse W-row norms
    """
    eps2 = jnp.float32(1e-24)  # (1e-12)^2 -> identical clamp to F.normalize

    # Recompute the weight-row inverse norms only when a new weight tile
    # arrives (inner batch index 0); the scratch persists across grid steps.
    @pl.when(pl.program_id(1) == 0)
    def _():
        w32 = w_ref[...].astype(jnp.float32)
        sq = w32 * w32                                        # (TO, F) f32
        # Row sums-of-squares directly in lane orientation (rows -> lanes):
        # ones(8, F) contracted with sq over F gives (8, TO); rows identical.
        ones = jnp.ones((8, sq.shape[1]), jnp.float32)
        w_ss = jax.lax.dot_general(
            ones, sq,
            dimension_numbers=(((1,), (1,)), ((), ())),
            preferred_element_type=jnp.float32)               # (8, TO)
        w_inv_ref[...] = jax.lax.rsqrt(jnp.maximum(w_ss[0:1, :], eps2))

    a = x_ref[...]
    b = w_ref[...]
    if mxu_bf16:  # optional, numerics-affecting: bf16 operands, f32 accumulate
        a = a.astype(jnp.bfloat16)
        b = b.astype(jnp.bfloat16)

    # Raw similarities: contract the feature axis of both operands directly
    # (x @ W^T), f32 accumulation on the MXU.
    raw = jax.lax.dot_general(
        a, b,
        dimension_numbers=(((1,), (1,)), ((), ())),
        preferred_element_type=jnp.float32)                   # (TB, TO)

    # Output-side scales: (TB,1) column scale (x norms + sigma) and (1,TO)
    # row scale (W norms) -- both natural broadcasts, no relayout.
    o_ref[...] = (raw * x_inv_ref[...] * w_inv_ref[...]).astype(o_ref.dtype)


def cosine_linear(x, weight, sigma=None, *, mxu_bf16=False, max_tb=None, max_to=None):
    """x: (B, in_features), weight: (out_features, in_features), sigma: scalar/(1,) or None."""
    B, F = x.shape
    O, F2 = weight.shape
    assert F == F2, "in_features mismatch"

    out_dtype = x.dtype
    itemsize = jnp.dtype(x.dtype).itemsize

    # Input-row inverse L2 norms with sigma folded in, computed once per call
    # (x is the small operand; this removes the per-output-tile recompute).
    x32 = x.astype(jnp.float32)
    x_inv = jax.lax.rsqrt(
        jnp.maximum(jnp.sum(x32 * x32, axis=1, keepdims=True), jnp.float32(1e-24)))
    if sigma is not None:
        x_inv = x_inv * jnp.asarray(sigma, jnp.float32).reshape(())   # (B, 1) f32

    # ---- tile selection (VMEM-capacity aware) ----
    try:
        vmem_cap = int(pltpu.get_tpu_info().vmem_capacity_bytes)
    except Exception:
        vmem_cap = 64 * 1024 * 1024          # conservative fallback (v7x)
    budget = int(0.40 * vmem_cap)

    def est(tb, to):
        # double-buffered blocks + persistent scratch + in-kernel f32 temporaries
        blocks = 2 * (tb * F + to * F) * itemsize                  # x, W tiles
        blocks += 2 * tb * to * jnp.dtype(out_dtype).itemsize      # out tiles
        blocks += 2 * tb * 4                                       # x_inv tiles
        scratch = to * 4                                           # cached w_inv
        temps = tb * to * 4 + 2 * to * F * 4                       # raw + w32/sq
        return blocks + scratch + temps

    # Output-tile width: multiple of 128 (lane-dense stores) never exceeding O,
    # or full-extent when O < 128.  Batch tile: largest candidate that fits the
    # VMEM budget, never exceeding B (full-extent block when B is small).
    if O >= 128:
        to_opts = [t for t in (256, 128) if t <= (O // 128) * 128]
    else:
        to_opts = [O]
    if max_to is not None:
        to_opts = [t for t in to_opts if t <= max_to] or to_opts[-1:]
    tb_cands = (512, 256, 128, 64, 32, 16, 8)
    if max_tb is not None:
        tb_cands = tuple(t for t in tb_cands if t <= max_tb) or (8,)

    TB = TO = None
    for to in to_opts:
        for cand in tb_cands:
            tb = min(cand, B)
            if est(tb, to) <= budget:
                TB, TO = tb, to
                break
        if TB is not None:
            break
    if TB is None:
        # TODO(synk): K-axis tiling over in_features for very large F.
        TO = to_opts[-1]
        TB = min(tb_cands[-1], B)

    grid = (pl.cdiv(O, TO), pl.cdiv(B, TB))

    vmem_limit = int(min(max(int(1.25 * est(TB, TO)) + (4 << 20), 32 << 20),
                         max(vmem_cap - (16 << 20), 32 << 20)))

    kernel = partial(_cosine_linear_kernel, bool(mxu_bf16))

    return pl.pallas_call(
        kernel,
        out_shape=jax.ShapeDtypeStruct((B, O), out_dtype),
        grid=grid,
        in_specs=[
            pl.BlockSpec((TB, 1), lambda j, i: (i, 0)),   # x_inv (f32)
            pl.BlockSpec((TB, F), lambda j, i: (i, 0)),   # x tile (re-streamed)
            pl.BlockSpec((TO, F), lambda j, i: (j, 0)),   # W tile (resident along inner axis)
        ],
        out_specs=pl.BlockSpec((TB, TO), lambda j, i: (i, j)),
        scratch_shapes=[pltpu.VMEM((1, TO), jnp.float32)],
        compiler_params=pltpu.CompilerParams(
            # inner (batch) axis must stay sequential so the cached w_inv
            # scratch is always initialized at inner index 0.
            dimension_semantics=("parallel", "arbitrary"),
            vmem_limit_bytes=vmem_limit,
        ),
    )(x_inv, x, weight)


def init_params(key, in_features, out_features, use_sigma=True):
    # Matches reset_parameters(): weight ~ U(-stdv, stdv), sigma = 1.0
    stdv = 1.0 / math.sqrt(in_features)
    weight = jax.random.uniform(
        key, (out_features, in_features), jnp.float32, minval=-stdv, maxval=stdv)
    sigma = jnp.ones((1,), jnp.float32) if use_sigma else None
    return weight, sigma


def _reference(x, weight, sigma):
    eps = 1e-12
    xn = x / jnp.maximum(jnp.linalg.norm(x, axis=1, keepdims=True), eps)
    wn = weight / jnp.maximum(jnp.linalg.norm(weight, axis=1, keepdims=True), eps)
    out = xn @ wn.T
    if sigma is not None:
        out = jnp.asarray(sigma, jnp.float32).reshape(()) * out
    return out


if __name__ == "__main__":
    key = jax.random.PRNGKey(0)
    k1, k2, k3, k4, k5, k6 = jax.random.split(key, 6)
    ATOL = RTOL = 3e-5

    # Test 1: tiny shapes (single grid step, O < 128), sigma = 1 (reset_parameters).
    B, Fi, Oo = 8, 32, 16
    x = jax.random.normal(k1, (B, Fi), jnp.float32)
    weight, sigma = init_params(k2, Fi, Oo, use_sigma=True)
    out = jax.block_until_ready(cosine_linear(x, weight, sigma))
    ref = _reference(x, weight, sigma)
    assert out.shape == (B, Oo)
    assert jnp.allclose(out, ref, atol=ATOL, rtol=RTOL), "mismatch vs reference (test 1)"

    # Test 1b: sigma = None path.
    out1b = jax.block_until_ready(cosine_linear(x, weight, None))
    ref1b = _reference(x, weight, None)
    assert jnp.allclose(out1b, ref1b, atol=ATOL, rtol=RTOL), "mismatch vs reference (test 1b)"

    # Test 2: non-aligned shapes exercising ragged O edge tiles (no padding), sigma != 1.
    B2, F2_, O2 = 40, 200, 300
    x2 = jax.random.normal(k3, (B2, F2_), jnp.float32)
    w2, _ = init_params(k4, F2_, O2, use_sigma=True)
    sigma2 = jnp.asarray([0.7], jnp.float32)
    out2 = jax.block_until_ready(cosine_linear(x2, w2, sigma2))
    ref2 = _reference(x2, w2, sigma2)
    assert out2.shape == (B2, O2)
    assert jnp.allclose(out2, ref2, atol=ATOL, rtol=RTOL), "mismatch vs reference (test 2)"

    # Test 3: force small tiles -> multi-tile grid on BOTH axes, exercising the
    # resident W tile + cached w_inv scratch across inner batch steps.
    B3, F3, O3 = 48, 64, 384
    x3 = jax.random.normal(k5, (B3, F3), jnp.float32)
    w3, _ = init_params(k6, F3, O3, use_sigma=True)
    sigma3 = jnp.asarray([1.3], jnp.float32)
    out3 = jax.block_until_ready(cosine_linear(x3, w3, sigma3, max_tb=16, max_to=128))
    ref3 = _reference(x3, w3, sigma3)
    assert out3.shape == (B3, O3)
    assert jnp.allclose(out3, ref3, atol=ATOL, rtol=RTOL), "mismatch vs reference (test 3)"

    print("KERNEL_OK")
</pallas_src>

<mosaic_0001>
module attributes {stable_mosaic.version = 11 : i64} {
  func.func @_cosine_linear_kernel(%arg0: i32, %arg1: i32, %arg2: memref<8x1xf32, #tpu.memory_space<vmem>>, %arg3: memref<8x32xf32, #tpu.memory_space<vmem>>, %arg4: memref<16x32xf32, #tpu.memory_space<vmem>>, %arg5: memref<8x16xf32, #tpu.memory_space<vmem>>, %arg6: memref<1x16xf32, #tpu.memory_space<vmem>>) attributes {dimension_semantics = [#tpu.dimension_semantics<parallel>, #tpu.dimension_semantics<arbitrary>], iteration_bounds = array<i64: 1, 1>, scalar_prefetch = 0 : i64, scratch_operands = 1 : i64, tpu.core_type = #tpu.core_type<tc>, window_params = [{transform_indices = @transform_0, window_bounds = array<i64: 8, 1>}, {transform_indices = @transform_1, window_bounds = array<i64: 8, 32>}, {transform_indices = @transform_2, window_bounds = array<i64: 16, 32>}, {transform_indices = @transform_3, window_bounds = array<i64: 8, 16>}]} {
    %c0_i32 = arith.constant 0 : i32
    %0 = arith.cmpi eq, %arg1, %c0_i32 : i32
    %1 = arith.extui %0 : i1 to i32
    %cst = arith.constant 1.000000e-24 : f32
    %c0_i32_0 = arith.constant 0 : i32
    %2 = arith.cmpi ne, %1, %c0_i32_0 : i32
    scf.if %2 {
      %c0_11 = arith.constant 0 : index
      %c0_12 = arith.constant 0 : index
      %13 = vector.load %arg4[%c0_11, %c0_12] : memref<16x32xf32, #tpu.memory_space<vmem>>, vector<16x32xf32>
      %14 = arith.mulf %13, %13 : vector<16x32xf32>
      %cst_13 = arith.constant 1.000000e+00 : f32
      %15 = vector.broadcast %cst_13 : f32 to vector<8x32xf32>
      %cst_14 = arith.constant dense<0.000000e+00> : vector<8x16xf32>
      %16 = tpu.matmul %15, %14, %cst_14 {dimension_numbers = #tpu.dot_dimension_numbers<[1], [1], [0], [0], [0, 0, 1, 0], [], []>} : vector<8x32xf32>, vector<16x32xf32>, vector<8x16xf32> -> vector<8x16xf32>
      %17 = vector.extract_strided_slice %16 {offsets = [0, 0], sizes = [1, 16], strides = [1, 1]} : vector<8x16xf32> to vector<1x16xf32>
      %18 = vector.broadcast %cst : f32 to vector<1x16xf32>
      %19 = arith.maximumf %17, %18 : vector<1x16xf32>
      %20 = math.rsqrt %19 : vector<1x16xf32>
      %c0_15 = arith.constant 0 : index
      %c0_16 = arith.constant 0 : index
      %21 = vector.load %arg6[%c0_15, %c0_16] : memref<1x16xf32, #tpu.memory_space<vmem>>, vector<1x16xf32>
      tpu.vector_store %arg6[%c0_15, %c0_16], %20 {strides = array<i32>} : memref<1x16xf32, #tpu.memory_space<vmem>>, vector<1x16xf32>,
    } else {
    }
    %c0 = arith.constant 0 : index
    %c0_1 = arith.constant 0 : index
    %3 = vector.load %arg3[%c0, %c0_1] : memref<8x32xf32, #tpu.memory_space<vmem>>, vector<8x32xf32>
    %c0_2 = arith.constant 0 : index
    %c0_3 = arith.constant 0 : index
    %4 = vector.load %arg4[%c0_2, %c0_3] : memref<16x32xf32, #tpu.memory_space<vmem>>, vector<16x32xf32>
    %cst_4 = arith.constant dense<0.000000e+00> : vector<8x16xf32>
    %5 = tpu.matmul %3, %4, %cst_4 {dimension_numbers = #tpu.dot_dimension_numbers<[1], [1], [0], [0], [0, 0, 1, 0], [], []>} : vector<8x32xf32>, vector<16x32xf32>, vector<8x16xf32> -> vector<8x16xf32>
    %c0_5 = arith.constant 0 : index
    %c0_6 = arith.constant 0 : index
    %6 = vector.load %arg2[%c0_5, %c0_6] : memref<8x1xf32, #tpu.memory_space<vmem>>, vector<8x1xf32>
    %7 = vector.broadcast %6 : vector<8x1xf32> to vector<8x16xf32>
    %8 = arith.mulf %5, %7 : vector<8x16xf32>
    %c0_7 = arith.constant 0 : index
    %c0_8 = arith.constant 0 : index
    %9 = vector.load %arg6[%c0_7, %c0_8] : memref<1x16xf32, #tpu.memory_space<vmem>>, vector<1x16xf32>
    %10 = vector.broadcast %9 : vector<1x16xf32> to vector<8x16xf32>
    %11 = arith.mulf %8, %10 : vector<8x16xf32>
    %c0_9 = arith.constant 0 : index
    %c0_10 = arith.constant 0 : index
    %12 = vector.load %arg5[%c0_9, %c0_10] : memref<8x16xf32, #tpu.memory_space<vmem>>, vector<8x16xf32>
    tpu.vector_store %arg5[%c0_9, %c0_10], %11 {strides = array<i32>} : memref<8x16xf32, #tpu.memory_space<vmem>>, vector<8x16xf32>,
    return
  }
  func.func @transform_0(%arg0: i32, %arg1: i32) -> (i32, i32) {
    %c0_i32 = arith.constant 0 : i32
    %c0_i32_0 = arith.constant 0 : i32
    return %arg1, %c0_i32 : i32, i32
  }
  func.func @transform_1(%arg0: i32, %arg1: i32) -> (i32, i32) {
    %c0_i32 = arith.constant 0 : i32
    %c0_i32_0 = arith.constant 0 : i32
    return %arg1, %c0_i32 : i32, i32
  }
  func.func @transform_2(%arg0: i32, %arg1: i32) -> (i32, i32) {
    %c0_i32 = arith.constant 0 : i32
    %c0_i32_0 = arith.constant 0 : i32
    return %arg0, %c0_i32 : i32, i32
  }
  func.func @transform_3(%arg0: i32, %arg1: i32) -> (i32, i32) {
    %c0_i32 = arith.constant 0 : i32
    return %arg1, %arg0 : i32, i32
  }
}

</mosaic_0001>

<llo_original>
// kernel: tpu_custom_call.1
$region0: #{tpu_custom_call.1}
  #allocation0 [shape = 'u32[]', space=smem, size = 0x4, offset = 0x4, fixed_abs, tag = 'smem constant byte address 0x4 - core index']
  #allocation1 [shape = 'u32[144,128]{1,0:T(1,128)}', space=vmem, size = 0x12000, scoped, tag = 'internal scratch']
  #allocation2 [shape = 'f32[1,16]{1,0:T(1,128)}', space=vmem, size = 0x200, scoped, tag = 'scratch operand']
  %s0 = inlined_call_operand.vmem [shape: f32[8,1], index: 0, kind: input, shape index: {}]
  %s1 = inlined_call_operand.hbm [shape: f32[8,32], index: 1, kind: input, shape index: {}]
  %s2 = inlined_call_operand.vmem [shape: f32[16,32], index: 2, kind: input, shape index: {}]
  %s3 = inlined_call_operand.hbm [shape: f32[8,16], index: 3, kind: output, shape index: {}]
  %s4 = sld [smem:[#allocation0]]
  $region30: #{tpu_custom_call.1} parent=0
    _
  %s6 = ssub.s32 1, %s4
  %s7 = scalar_select 0, %s6, %s4
  $region1: #{tpu_custom_call.1} parent=0
    #allocation3 [shape = 'u8[4096]{0}', space=vmem, size = 0x1000, scoped, tag = 'input window, operand 1, single buffered']
    #allocation4 [shape = 's32[1]{0}', space=sflag, size = 0x4, scoped, tag = 'scoped memory for tpu_custom_call.1']
    #allocation5 [shape = 's32[1]{0}', space=sflag, size = 0x4, scoped, tag = 'scoped memory for tpu_custom_call.1']
    #allocation6 [shape = 'u8[4096]{0}', space=vmem, size = 0x1000, scoped, tag = 'output window, operand 0, single buffered']
    %8 = vsyncpa [#allocation4], 0
    %9 = vsyncpa [#allocation5], 0
    // Predicated region
    $region2: #{tpu_custom_call.1} parent=1 // pred_check
      _
    $region3: #{tpu_custom_call.1} parent=1 // pred_check_branch
      %11 = sbr.rel (0) target = $region5
    $region4: #{tpu_custom_call.1} parent=1 // pred_region
      _
    $region5: #{tpu_custom_call.1} parent=1 // pred_fallthru
      _
    // Predicated region
    $region6: #{tpu_custom_call.1} parent=1 // pred_check
      _
    $region7: #{tpu_custom_call.1} parent=1 // pred_check_branch
      %13 = sbr.rel (0) target = $region9
    $region8: #{tpu_custom_call.1} parent=1 // pred_region
      %s15 = ssub.s32 128, 128
      %16 = vsyncadd [#allocation4], %s15
      %s18 = sshll.u32 [#allocation3], 4
      %s19 = int_to_ptr.vmem [resolvable:$true] %s18
      %21 = dma.hbm_to_vmem [thread:$0]  %s1, 128, %s19, [#allocation4]
    $region9: #{tpu_custom_call.1} parent=1 // pred_fallthru
      _
    // Predicated region
    $region10: #{tpu_custom_call.1} parent=1 // pred_check
      _
    $region11: #{tpu_custom_call.1} parent=1 // pred_check_branch
      %23 = sbr.rel (0) target = $region13
    $region12: #{tpu_custom_call.1} parent=1 // pred_region
      _
    $region13: #{tpu_custom_call.1} parent=1 // pred_fallthru
      _
    // Predicated region
    $region14: #{tpu_custom_call.1} parent=1 // pred_check
      _
    $region15: #{tpu_custom_call.1} parent=1 // pred_check_branch
      %25 = sbr.rel (0) target = $region17
    $region16: #{tpu_custom_call.1} parent=1 // pred_region
      %26 = dma.done [#allocation4], 128
    $region17: #{tpu_custom_call.1} parent=1 // pred_fallthru
      _
    %p27 = scmp.eq.s32.totalorder 0, 0
    // Predicated region
    $region18: #{tpu_custom_call.1} parent=1 // pred_check
      %p28 = pneg %p27
    $region19: #{tpu_custom_call.1} parent=1 // pred_check_branch
      %30 = sbr.rel (%p28) target = $region21
    $region20: #{tpu_custom_call.1} parent=1 // pred_region
      %v31 = vld [vmem:[%s2] sm:$0xff]
      %v32 = vld [vmem:[%s2 + $0x8] sm:$0xff]
      %v33 = vmul.f32 %v31, %v31
      %v34 = vmul.f32 %v32, %v32
      %vm35 = vcmask 261120
      %v37 = vsel %vm35, 1.0, 0
      %v40 = vsel %vm35, %v33, 0
      %v43 = vsel %vm35, %v34, 0
      %45 = vmatprep.subr.mxu0 0.0
      %46 = vmatpush1.xpose.msra.mxu0 %v40
      %47 = vmatprep.subr.mxu0 0.0
      %48 = vmatpush1.xpose.msra.mxu0 %v43
      %49 = vmatprep.subr.mxu0 0.0
      %50 = vmatpush1.xpose.msra.mxu0 0.0
      %51 = vmatprep.subr.mxu0 0.0
      %52 = vmatpush1.xpose.msra.mxu0 0.0
      %53 = vmatprep.subr.mxu0 0.0
      %54 = vmatpush1.xpose.msra.mxu0 0.0
      %55 = vmatprep.subr.mxu0 0.0
      %56 = vmatpush1.xpose.msra.mxu0 0.0
      %57 = vmatprep.subr.mxu0 0.0
      %58 = vmatpush1.xpose.msra.mxu0 0.0
      %59 = vmatprep.subr.mxu0 0.0
      %60 = vmatpush1.xpose.msra.mxu0 0.0
      %61 = vmatprep.subr.mxu0 0.0
      %62 = vmatpush1.xpose.msra.mxu0 0.0
      %63 = vmatprep.subr.mxu0 0.0
      %64 = vmatpush1.xpose.msra.mxu0 0.0
      %65 = vmatprep.subr.mxu0 0.0
      %66 = vmatpush1.xpose.msra.mxu0 0.0
      %67 = vmatprep.subr.mxu0 0.0
      %68 = vmatpush1.xpose.msra.mxu0 0.0
      %69 = vmatprep.subr.mxu0 0.0
      %70 = vmatpush1.xpose.msra.mxu0 0.0
      %71 = vmatprep.subr.mxu0 0.0
      %72 = vmatpush1.xpose.msra.mxu0 0.0
      %73 = vmatprep.subr.mxu0 0.0
      %74 = vmatpush1.xpose.msra.mxu0 0.0
      %75 = vmatprep.subr.mxu0 0.0
      %76 = vmatpush1.xpose.msra.mxu0 0.0
      %77 = vmatprep.subr.mxu0 0.0
      %78 = vmatpush1.xpose.msra.mxu0 0.0
      %79 = vmatprep.subr.mxu0 0.0
      %80 = vmatpush1.xpose.msra.mxu0 0.0
      %81 = vmatprep.subr.mxu0 0.0
      %82 = vmatpush1.xpose.msra.mxu0 0.0
      %83 = vmatprep.subr.mxu0 0.0
      %84 = vmatpush1.xpose.msra.mxu0 0.0
      %85 = vmatprep.subr.mxu0 0.0
      %86 = vmatpush1.xpose.msra.mxu0 0.0
      %87 = vmatprep.subr.mxu0 0.0
      %88 = vmatpush1.xpose.msra.mxu0 0.0
      %89 = vmatprep.subr.mxu0 0.0
      %90 = vmatpush1.xpose.msra.mxu0 0.0
      %91 = vmatprep.subr.mxu0 0.0
      %92 = vmatpush1.xpose.msra.mxu0 0.0
      %93 = vmatprep.subr.mxu0 0.0
      %94 = vmatpush1.xpose.msra.mxu0 0.0
      %95 = vmatprep.subr.mxu0 0.0
      %96 = vmatpush1.xpose.msra.mxu0 0.0
      %97 = vmatprep.subr.mxu0 0.0
      %98 = vmatpush1.xpose.msra.mxu0 0.0
      %99 = vmatprep.subr.mxu0 0.0
      %100 = vmatpush1.xpose.msra.mxu0 0.0
      %101 = vmatprep.subr.mxu0 0.0
      %102 = vmatpush1.xpose.msra.mxu0 0.0
      %103 = vmatprep.subr.mxu0 0.0
      %104 = vmatpush1.xpose.msra.mxu0 0.0
      %105 = vmatprep.subr.mxu0 0.0
      %106 = vmatpush1.xpose.msra.mxu0 0.0
      %107 = vmatprep.subr.mxu0 0.0
      %108 = vmatpush1.xpose.msra.mxu0 0.0
      %109 = vmatprep.mubr.f32.mxu0 0.0
      %110 = vmatmul.mubr.f32.gmra.mrb[0].mxu0 %v37
      %v111 = vpop.f32.mrb[0].mxu0
      %v112 = vadd.f32 0.0, %v111
      %v113 = vpop.f32.mrb[0].mxu0
      %114 = vdwg.mxu0
      %v115 = vmax.f32 %v112, 1e-24
      %v116 = vrsqrt.pop %v115
      %vm117 = vcmask 122880
      %118 = vst.msk [vmem:[#allocation2] sm:$0x1] %vm117, %v116
    $region21: #{tpu_custom_call.1} parent=1 // pred_fallthru
      _
    %v119 = vld [vmem:[#allocation3] sm:$0xff]
    %v120 = vld [vmem:[%s2] sm:$0xff]
    %v121 = vld [vmem:[%s2 + $0x8] sm:$0xff]
    %vm122 = vcmask 261120
    %v124 = vsel %vm122, %v119, 0
    %v127 = vsel %vm122, %v120, 0
    %v130 = vsel %vm122, %v121, 0
    %132 = vmatprep.subr.mxu0 0.0
    %133 = vmatpush1.xpose.msra.mxu0 %v127
    %134 = vmatprep.subr.mxu0 0.0
    %135 = vmatpush1.xpose.msra.mxu0 %v130
    %136 = vmatprep.subr.mxu0 0.0
    %137 = vmatpush1.xpose.msra.mxu0 0.0
    %138 = vmatprep.subr.mxu0 0.0
    %139 = vmatpush1.xpose.msra.mxu0 0.0
    %140 = vmatprep.subr.mxu0 0.0
    %141 = vmatpush1.xpose.msra.mxu0 0.0
    %142 = vmatprep.subr.mxu0 0.0
    %143 = vmatpush1.xpose.msra.mxu0 0.0
    %144 = vmatprep.subr.mxu0 0.0
    %145 = vmatpush1.xpose.msra.mxu0 0.0
    %146 = vmatprep.subr.mxu0 0.0
    %147 = vmatpush1.xpose.msra.mxu0 0.0
    %148 = vmatprep.subr.mxu0 0.0
    %149 = vmatpush1.xpose.msra.mxu0 0.0
    %150 = vmatprep.subr.mxu0 0.0
    %151 = vmatpush1.xpose.msra.mxu0 0.0
    %152 = vmatprep.subr.mxu0 0.0
    %153 = vmatpush1.xpose.msra.mxu0 0.0
    %154 = vmatprep.subr.mxu0 0.0
    %155 = vmatpush1.xpose.msra.mxu0 0.0
    %156 = vmatprep.subr.mxu0 0.0
    %157 = vmatpush1.xpose.msra.mxu0 0.0
    %158 = vmatprep.subr.mxu0 0.0
    %159 = vmatpush1.xpose.msra.mxu0 0.0
    %160 = vmatprep.subr.mxu0 0.0
    %161 = vmatpush1.xpose.msra.mxu0 0.0
    %162 = vmatprep.subr.mxu0 0.0
    %163 = vmatpush1.xpose.msra.mxu0 0.0
    %164 = vmatprep.subr.mxu0 0.0
    %165 = vmatpush1.xpose.msra.mxu0 0.0
    %166 = vmatprep.subr.mxu0 0.0
    %167 = vmatpush1.xpose.msra.mxu0 0.0
    %168 = vmatprep.subr.mxu0 0.0
    %169 = vmatpush1.xpose.msra.mxu0 0.0
    %170 = vmatprep.subr.mxu0 0.0
    %171 = vmatpush1.xpose.msra.mxu0 0.0
    %172 = vmatprep.subr.mxu0 0.0
    %173 = vmatpush1.xpose.msra.mxu0 0.0
    %174 = vmatprep.subr.mxu0 0.0
    %175 = vmatpush1.xpose.msra.mxu0 0.0
    %176 = vmatprep.subr.mxu0 0.0
    %177 = vmatpush1.xpose.msra.mxu0 0.0
    %178 = vmatprep.subr.mxu0 0.0
    %179 = vmatpush1.xpose.msra.mxu0 0.0
    %180 = vmatprep.subr.mxu0 0.0
    %181 = vmatpush1.xpose.msra.mxu0 0.0
    %182 = vmatprep.subr.mxu0 0.0
    %183 = vmatpush1.xpose.msra.mxu0 0.0
    %184 = vmatprep.subr.mxu0 0.0
    %185 = vmatpush1.xpose.msra.mxu0 0.0
    %186 = vmatprep.subr.mxu0 0.0
    %187 = vmatpush1.xpose.msra.mxu0 0.0
    %188 = vmatprep.subr.mxu0 0.0
    %189 = vmatpush1.xpose.msra.mxu0 0.0
    %190 = vmatprep.subr.mxu0 0.0
    %191 = vmatpush1.xpose.msra.mxu0 0.0
    %192 = vmatprep.subr.mxu0 0.0
    %193 = vmatpush1.xpose.msra.mxu0 0.0
    %194 = vmatprep.subr.mxu0 0.0
    %195 = vmatpush1.xpose.msra.mxu0 0.0
    %196 = vmatprep.mubr.f32.mxu0 0.0
    %197 = vmatmul.mubr.f32.gmra.mrb[0].mxu0 %v124
    %v198 = vpop.f32.mrb[0].mxu0
    %v199 = vadd.f32 0.0, %v198
    %v200 = vpop.f32.mrb[0].mxu0
    %201 = vdwg.mxu0
    %v202 = vld [vmem:[%s0] sm:$0xff]
    %204 = vset.pattern.permute.xlu0 0
    %205 = vperm.xlu0 %204, %v202
    %v206 = vpop.permute.xlu0 %205
    %v208 = vmul.f32 %v199, %v206
    %v209 = vld [vmem:[#allocation2] sm:$0x1]
    %v211 = vlaneseq
    %v212 = vshrl.u32 %v211, 7
    %v213 = vsub.s32 0, %v212
    %v214 = vrot.slane %v209, %v213
    %v216 = vmul.f32 %v208, %v214
    %vm217 = vcmask 130048
    %218 = vst.msk [vmem:[#allocation6] sm:$0xff] %vm217, %v216
    // Predicated region
    $region22: #{tpu_custom_call.1} parent=1 // pred_check
      _
    $region23: #{tpu_custom_call.1} parent=1 // pred_check_branch
      %220 = sbr.rel (0) target = $region25
    $region24: #{tpu_custom_call.1} parent=1 // pred_region
      %s222 = ssub.s32 128, 128
      %223 = vsyncadd [#allocation5], %s222
      %s225 = sshll.u32 [#allocation6], 4
      %s226 = int_to_ptr.vmem [resolvable:$true] %s225
      %228 = dma.vmem_to_hbm [thread:$0]  %s226, 128, %s3, [#allocation5]
    $region25: #{tpu_custom_call.1} parent=1 // pred_fallthru
      _
    // Predicated region
    $region26: #{tpu_custom_call.1} parent=1 // pred_check
      _
    $region27: #{tpu_custom_call.1} parent=1 // pred_check_branch
      %230 = sbr.rel (0) target = $region29
    $region28: #{tpu_custom_call.1} parent=1 // pred_region
      %231 = dma.done [#allocation5], 128
    $region29: #{tpu_custom_call.1} parent=1 // pred_fallthru
      _
    %232 = vsyncpa [#allocation4], 1
    %233 = vsyncpa [#allocation5], 1

</llo_original>
